<compile_context>
chip_gen: v7x
topology: tpu7x:2x2x1
jax: 0.10.0
libtpu: 0.0.40
codegen_flags: <defaults>
</compile_context>

<pallas_src>
import math
import jax
import jax.numpy as jnp
from jax.experimental import pallas as pl
from jax.experimental.pallas import tpu as pltpu


def isbase2(x):
    y = math.log2(x)
    return y - y // 1 == 0


def _mlp_generator_kernel(x_ref, w1_ref, b1_ref, w2_ref, b2_ref, o_ref):
    """Fused MLP generator tile:
        h = x @ W1 + b1            (bf16 x bf16 -> f32 acc, bias in f32)
        y = tanh(h @ W2_tile + b2) (bf16 x bf16 -> f32 acc, epilogue in f32)
    Hidden h is recomputed per output tile (tiny), so tiles are independent.
    """
    h = (
        jnp.dot(x_ref[...], w1_ref[...], preferred_element_type=jnp.float32)
        + b1_ref[...]
    )
    y = (
        jnp.dot(h.astype(w2_ref.dtype), w2_ref[...],
                preferred_element_type=jnp.float32)
        + b2_ref[...]
    )
    o_ref[...] = jnp.tanh(y).astype(o_ref.dtype)


def _pick_tile_n(B, Z, H, O, budget_bytes=16 * 1024 * 1024):
    """Largest output tile that divides O, is lane-aligned, and fits the budget."""
    if O % 128 != 0:
        return O  # single full block (block == full dims is always legal)
    # resident (grid-invariant) operands: x/W1 in bf16, b1 in f32, h in f32
    fixed = 2 * B * Z + 2 * Z * H + 4 * H + 4 * B * H
    candidates = [O] + [t for t in range(O - 128, 0, -128) if O % t == 0]
    for t in candidates:
        per_tile = 2 * (2 * H * t + 4 * t + 4 * B * t)  # double-buffered W2/b2/out tiles
        if fixed + per_tile <= budget_bytes:
            return t
    return 128


def mlp_generator_forward(x, w1, b1, w2, b2, *, tile_n=None):
    """x: (B, zdim); w1: (zdim, H); b1: (1, H); w2: (H, O); b2: (1, O)."""
    B, Z = x.shape
    Zw, H = w1.shape
    Hw, O = w2.shape
    assert Z == Zw and H == Hw

    # Pad batch to a multiple of 8 sublanes (min 8) so vregs/MXU rows are filled
    # and output stores are unmasked. Padded rows are sliced off at the end.
    Bp = max(8, ((B + 7) // 8) * 8)
    if Bp != B:
        x = jnp.pad(x, ((0, Bp - B), (0, 0)))

    # bf16 matmul inputs (f32 accumulation inside the kernel), f32 biases/output.
    xb = x.astype(jnp.bfloat16)
    w1b = w1.astype(jnp.bfloat16)
    w2b = w2.astype(jnp.bfloat16)
    b1f = b1.reshape(1, H).astype(jnp.float32)
    b2f = b2.reshape(1, O).astype(jnp.float32)

    if tile_n is None:
        tile_n = _pick_tile_n(Bp, Z, H, O)
    assert O % tile_n == 0
    grid = (O // tile_n,)

    out_padded = pl.pallas_call(
        _mlp_generator_kernel,
        out_shape=jax.ShapeDtypeStruct((Bp, O), jnp.float32),
        grid_spec=pltpu.PrefetchScalarGridSpec(
            num_scalar_prefetch=0,
            grid=grid,
            in_specs=[
                pl.BlockSpec((Bp, Z), lambda j: (0, 0)),        # x (full, resident)
                pl.BlockSpec((Z, H), lambda j: (0, 0)),         # W1 (full, resident)
                pl.BlockSpec((1, H), lambda j: (0, 0)),         # b1 (full, resident)
                pl.BlockSpec((H, tile_n), lambda j: (0, j)),    # W2 tile
                pl.BlockSpec((1, tile_n), lambda j: (0, j)),    # b2 tile
            ],
            out_specs=pl.BlockSpec((Bp, tile_n), lambda j: (0, j)),
        ),
        compiler_params=pltpu.CompilerParams(
            # Tiles are independent (no scratch carry) -> safe to shard across
            # TensorCores on v7x when the grid has >1 step.
            dimension_semantics=("parallel",),
        ),
    )(xb, w1b, b1f, w2b, b2f)

    return out_padded[:B]


def init_params(key, zdim, layer_size, output_size):
    """Deterministic init mimicking PyTorch Linear default (uniform ±1/sqrt(fan_in)).

    Stored pre-transposed as (in, out) so the kernel does x @ W directly,
    numerically identical to PyTorch's x @ W.T with W of shape (out, in).
    """
    k1, k2, k3, k4 = jax.random.split(key, 4)
    bound1 = 1.0 / math.sqrt(zdim)
    bound2 = 1.0 / math.sqrt(layer_size)
    w1 = jax.random.uniform(k1, (zdim, layer_size), jnp.float32, -bound1, bound1)
    b1 = jax.random.uniform(k2, (1, layer_size), jnp.float32, -bound1, bound1)
    w2 = jax.random.uniform(k3, (layer_size, output_size), jnp.float32, -bound2, bound2)
    b2 = jax.random.uniform(k4, (1, output_size), jnp.float32, -bound2, bound2)
    return w1, b1, w2, b2


if __name__ == "__main__":
    # settings consistent with the module: power-of-2 image size
    settings = dict(zdim=32, nchannels=4, image_size=16, layer_size=64)
    zdim = settings["zdim"]
    layer_size = settings["layer_size"]
    output_size = settings["image_size"] ** 2 * settings["nchannels"]  # 1024
    assert isbase2(settings["image_size"])

    batch = 2
    key = jax.random.PRNGKey(0)
    kx, kp = jax.random.split(key)
    x = jax.random.normal(kx, (batch, zdim), jnp.float32)
    w1, b1, w2, b2 = init_params(kp, zdim, layer_size, output_size)

    out = mlp_generator_forward(x, w1, b1, w2, b2)
    out = jax.block_until_ready(out)
    assert out.shape == (batch, output_size)

    # Reference that follows the kernel's bf16-input / f32-accumulate numerics.
    xb = x.astype(jnp.bfloat16).astype(jnp.float32)
    w1b = w1.astype(jnp.bfloat16).astype(jnp.float32)
    w2b = w2.astype(jnp.bfloat16).astype(jnp.float32)
    h_ref = xb @ w1b + b1
    ref_bf = jnp.tanh(h_ref.astype(jnp.bfloat16).astype(jnp.float32) @ w2b + b2)
    assert jnp.allclose(out, ref_bf, atol=1e-4, rtol=1e-4)

    # Looser check against full-f32 PyTorch-equivalent semantics.
    ref_f32 = jnp.tanh((x @ w1 + b1) @ w2 + b2)
    assert jnp.allclose(out, ref_f32, atol=5e-2, rtol=5e-2)

    print("KERNEL_OK")
</pallas_src>

<mosaic_0001>
module attributes {stable_mosaic.version = 11 : i64} {
  func.func @_mlp_generator_kernel(%arg0: i32, %arg1: memref<8x32xbf16, #tpu.memory_space<vmem>>, %arg2: memref<32x64xbf16, #tpu.memory_space<vmem>>, %arg3: memref<1x64xf32, #tpu.memory_space<vmem>>, %arg4: memref<64x1024xbf16, #tpu.memory_space<vmem>>, %arg5: memref<1x1024xf32, #tpu.memory_space<vmem>>, %arg6: memref<8x1024xf32, #tpu.memory_space<vmem>>) attributes {dimension_semantics = [#tpu.dimension_semantics<parallel>], iteration_bounds = array<i64: 1>, scalar_prefetch = 0 : i64, scratch_operands = 0 : i64, tpu.core_type = #tpu.core_type<tc>, window_params = [{pipeline_mode = #tpu.pipeline_mode<synchronous>, transform_indices = @transform_0, window_bounds = array<i64: 8, 32>}, {pipeline_mode = #tpu.pipeline_mode<synchronous>, transform_indices = @transform_1, window_bounds = array<i64: 32, 64>}, {pipeline_mode = #tpu.pipeline_mode<synchronous>, transform_indices = @transform_2, window_bounds = array<i64: 1, 64>}, {transform_indices = @transform_3, window_bounds = array<i64: 64, 1024>}, {transform_indices = @transform_4, window_bounds = array<i64: 1, 1024>}, {transform_indices = @transform_5, window_bounds = array<i64: 8, 1024>}]} {
    %c0 = arith.constant 0 : index
    %c0_0 = arith.constant 0 : index
    %0 = vector.load %arg1[%c0, %c0_0] : memref<8x32xbf16, #tpu.memory_space<vmem>>, vector<8x32xbf16>
    %c0_1 = arith.constant 0 : index
    %c0_2 = arith.constant 0 : index
    %1 = vector.load %arg2[%c0_1, %c0_2] : memref<32x64xbf16, #tpu.memory_space<vmem>>, vector<32x64xbf16>
    %cst = arith.constant dense<0.000000e+00> : vector<8x64xf32>
    %2 = tpu.matmul %0, %1, %cst {dimension_numbers = #tpu.dot_dimension_numbers<[1], [0], [0], [1], [0, 0, 1, 1], [], []>} : vector<8x32xbf16>, vector<32x64xbf16>, vector<8x64xf32> -> vector<8x64xf32>
    %c0_3 = arith.constant 0 : index
    %c0_4 = arith.constant 0 : index
    %3 = vector.load %arg3[%c0_3, %c0_4] : memref<1x64xf32, #tpu.memory_space<vmem>>, vector<1x64xf32>
    %4 = vector.broadcast %3 : vector<1x64xf32> to vector<8x64xf32>
    %5 = arith.addf %2, %4 : vector<8x64xf32>
    %6 = arith.truncf %5 : vector<8x64xf32> to vector<8x64xbf16>
    %c0_5 = arith.constant 0 : index
    %c0_6 = arith.constant 0 : index
    %7 = vector.load %arg4[%c0_5, %c0_6] : memref<64x1024xbf16, #tpu.memory_space<vmem>>, vector<64x1024xbf16>
    %cst_7 = arith.constant dense<0.000000e+00> : vector<8x1024xf32>
    %8 = tpu.matmul %6, %7, %cst_7 {dimension_numbers = #tpu.dot_dimension_numbers<[1], [0], [0], [1], [0, 0, 1, 1], [], []>} : vector<8x64xbf16>, vector<64x1024xbf16>, vector<8x1024xf32> -> vector<8x1024xf32>
    %c0_8 = arith.constant 0 : index
    %c0_9 = arith.constant 0 : index
    %9 = vector.load %arg5[%c0_8, %c0_9] : memref<1x1024xf32, #tpu.memory_space<vmem>>, vector<1x1024xf32>
    %10 = vector.broadcast %9 : vector<1x1024xf32> to vector<8x1024xf32>
    %11 = arith.addf %8, %10 : vector<8x1024xf32>
    %12 = math.tanh %11 : vector<8x1024xf32>
    %c0_10 = arith.constant 0 : index
    %c0_11 = arith.constant 0 : index
    %13 = vector.load %arg6[%c0_10, %c0_11] : memref<8x1024xf32, #tpu.memory_space<vmem>>, vector<8x1024xf32>
    tpu.vector_store %arg6[%c0_10, %c0_11], %12 {strides = array<i32>} : memref<8x1024xf32, #tpu.memory_space<vmem>>, vector<8x1024xf32>,
    return
  }
  func.func @transform_0(%arg0: i32) -> (i32, i32) {
    %c0_i32 = arith.constant 0 : i32
    %c0_i32_0 = arith.constant 0 : i32
    %c0_i32_1 = arith.constant 0 : i32
    return %c0_i32, %c0_i32_0 : i32, i32
  }
  func.func @transform_1(%arg0: i32) -> (i32, i32) {
    %c0_i32 = arith.constant 0 : i32
    %c0_i32_0 = arith.constant 0 : i32
    %c0_i32_1 = arith.constant 0 : i32
    return %c0_i32, %c0_i32_0 : i32, i32
  }
  func.func @transform_2(%arg0: i32) -> (i32, i32) {
    %c0_i32 = arith.constant 0 : i32
    %c0_i32_0 = arith.constant 0 : i32
    %c0_i32_1 = arith.constant 0 : i32
    return %c0_i32, %c0_i32_0 : i32, i32
  }
  func.func @transform_3(%arg0: i32) -> (i32, i32) {
    %c0_i32 = arith.constant 0 : i32
    %c0_i32_0 = arith.constant 0 : i32
    return %c0_i32, %arg0 : i32, i32
  }
  func.func @transform_4(%arg0: i32) -> (i32, i32) {
    %c0_i32 = arith.constant 0 : i32
    %c0_i32_0 = arith.constant 0 : i32
    return %c0_i32, %arg0 : i32, i32
  }
  func.func @transform_5(%arg0: i32) -> (i32, i32) {
    %c0_i32 = arith.constant 0 : i32
    %c0_i32_0 = arith.constant 0 : i32
    return %c0_i32, %arg0 : i32, i32
  }
}

</mosaic_0001>

<llo_original>
// kernel: tpu_custom_call.1
$region0: #{tpu_custom_call.1}
  #allocation0 [shape = 'u32[]', space=smem, size = 0x4, offset = 0x4, fixed_abs, tag = 'smem constant byte address 0x4 - core index']
  #allocation1 [shape = 'u32[144,128]{1,0:T(1,128)}', space=vmem, size = 0x12000, scoped, tag = 'internal scratch']
  %s0 = inlined_call_operand.hbm [shape: bf16[8,32], index: 0, kind: input, shape index: {}]
  %s1 = inlined_call_operand.hbm [shape: bf16[32,64], index: 1, kind: input, shape index: {}]
  %s2 = inlined_call_operand.vmem [shape: f32[1,64], index: 2, kind: input, shape index: {}]
  %s3 = inlined_call_operand.hbm [shape: bf16[64,1024], index: 3, kind: input, shape index: {}]
  %s4 = inlined_call_operand.vmem [shape: f32[1,1024], index: 4, kind: input, shape index: {}]
  %s5 = inlined_call_operand.hbm [shape: f32[8,1024], index: 5, kind: output, shape index: {}]
  %s6 = sld [smem:[#allocation0]]
  $region42: #{tpu_custom_call.1} parent=0
    _
  %s8 = ssub.s32 1, %s6
  %s9 = scalar_select 0, %s8, %s6
  $region1: #{tpu_custom_call.1} parent=0
    #allocation2 [shape = 'u8[2048]{0}', space=vmem, size = 0x800, scoped, tag = 'input window, operand 0, single buffered']
    #allocation3 [shape = 's32[1]{0}', space=sflag, size = 0x4, scoped, tag = 'scoped memory for tpu_custom_call.1']
    #allocation4 [shape = 's32[1]{0}', space=sflag, size = 0x4, scoped, tag = 'scoped memory for tpu_custom_call.1']
    #allocation5 [shape = 'u8[8192]{0}', space=vmem, size = 0x2000, scoped, tag = 'input window, operand 1, single buffered']
    #allocation6 [shape = 's32[1]{0}', space=sflag, size = 0x4, scoped, tag = 'scoped memory for tpu_custom_call.1']
    #allocation7 [shape = 'u8[131072]{0}', space=vmem, size = 0x20000, scoped, tag = 'input window, operand 3, single buffered']
    #allocation8 [shape = 'u8[32768]{0}', space=vmem, size = 0x8000, scoped, tag = 'output window, operand 0, single buffered']
    %10 = vsyncpa [#allocation3], 0
    %11 = vsyncpa [#allocation6], 0
    %12 = vsyncpa [#allocation4], 0
    // Predicated region
    $region2: #{tpu_custom_call.1} parent=1 // pred_check
      _
    $region3: #{tpu_custom_call.1} parent=1 // pred_check_branch
      %14 = sbr.rel (0) target = $region5
    $region4: #{tpu_custom_call.1} parent=1 // pred_region
      %s16 = ssub.s32 64, 64
      %17 = vsyncadd [#allocation3], %s16
      %s19 = sshll.u32 [#allocation2], 4
      %s20 = int_to_ptr.vmem [resolvable:$true] %s19
      %22 = dma.hbm_to_vmem [thread:$0]  %s0, 64, %s20, [#allocation3]
    $region5: #{tpu_custom_call.1} parent=1 // pred_fallthru
      _
    // Predicated region
    $region6: #{tpu_custom_call.1} parent=1 // pred_check
      _
    $region7: #{tpu_custom_call.1} parent=1 // pred_check_branch
      %24 = sbr.rel (0) target = $region9
    $region8: #{tpu_custom_call.1} parent=1 // pred_region
      %s26 = ssub.s32 256, 256
      %27 = vsyncadd [#allocation6], %s26
      %s28 = sshll.u32 [#allocation5], 4
      %s29 = int_to_ptr.vmem [resolvable:$true] %s28
      %34 = dma.hbm_to_vmem [thread:$0]  %s1, 256, %s29, [#allocation6], 64, 64, 4
    $region9: #{tpu_custom_call.1} parent=1 // pred_fallthru
      _
    // Predicated region
    $region10: #{tpu_custom_call.1} parent=1 // pred_check
      _
    $region11: #{tpu_custom_call.1} parent=1 // pred_check_branch
      %36 = sbr.rel (0) target = $region13
    $region12: #{tpu_custom_call.1} parent=1 // pred_region
      _
    $region13: #{tpu_custom_call.1} parent=1 // pred_fallthru
      _
    // Predicated region
    $region14: #{tpu_custom_call.1} parent=1 // pred_check
      _
    $region15: #{tpu_custom_call.1} parent=1 // pred_check_branch
      %38 = sbr.rel (0) target = $region17
    $region16: #{tpu_custom_call.1} parent=1 // pred_region
      %s40 = ssub.s32 4096, 4096
      %41 = vsyncadd [#allocation6], %s40
      %s42 = sshll.u32 [#allocation7], 4
      %s43 = int_to_ptr.vmem [resolvable:$true] %s42
      %48 = dma.hbm_to_vmem [thread:$0]  %s3, 4096, %s43, [#allocation6], 512, 512, 32
    $region17: #{tpu_custom_call.1} parent=1 // pred_fallthru
      _
    // Predicated region
    $region18: #{tpu_custom_call.1} parent=1 // pred_check
      _
    $region19: #{tpu_custom_call.1} parent=1 // pred_check_branch
      %50 = sbr.rel (0) target = $region21
    $region20: #{tpu_custom_call.1} parent=1 // pred_region
      _
    $region21: #{tpu_custom_call.1} parent=1 // pred_fallthru
      _
    // Predicated region
    $region22: #{tpu_custom_call.1} parent=1 // pred_check
      _
    $region23: #{tpu_custom_call.1} parent=1 // pred_check_branch
      %52 = sbr.rel (0) target = $region25
    $region24: #{tpu_custom_call.1} parent=1 // pred_region
      %53 = dma.done [#allocation3], 64
    $region25: #{tpu_custom_call.1} parent=1 // pred_fallthru
      _
    // Predicated region
    $region26: #{tpu_custom_call.1} parent=1 // pred_check
      _
    $region27: #{tpu_custom_call.1} parent=1 // pred_check_branch
      %55 = sbr.rel (0) target = $region29
    $region28: #{tpu_custom_call.1} parent=1 // pred_region
      %56 = dma.done [#allocation6], 256
    $region29: #{tpu_custom_call.1} parent=1 // pred_fallthru
      _
    // Predicated region
    $region30: #{tpu_custom_call.1} parent=1 // pred_check
      _
    $region31: #{tpu_custom_call.1} parent=1 // pred_check_branch
      %58 = sbr.rel (0) target = $region33
    $region32: #{tpu_custom_call.1} parent=1 // pred_region
      %59 = dma.done [#allocation6], 4096
    $region33: #{tpu_custom_call.1} parent=1 // pred_fallthru
      _
    %v61 = vld [vmem:[#allocation2] sm:$0xf]
    %v62 = vld [vmem:[#allocation5] sm:$0xf]
    %v63 = vld [vmem:[#allocation5 + $0x4] sm:$0xf]
    %v64 = vld [vmem:[#allocation5 + $0x8] sm:$0xf]
    %v65 = vld [vmem:[#allocation5 + $0xc] sm:$0xf]
    %v66 = vld [vmem:[%s2] sm:$0x1]
    %v68 = vlaneseq
    %v69 = vshrl.u32 %v68, 7
    %v70 = vsub.s32 0, %v69
    %v71 = vrot.slane %v66, %v70
    %v77 = vunpack.c.l.b16 %v62
    %v78 = vunpack.c.l.b16 %v63
    %v79 = vunpack.c.l.b16 %v64
    %v80 = vunpack.c.l.b16 %v65
    %v81 = vpack.c.b16 %v78, %v77
    %v82 = vpack.c.b16 %v80, %v79
    %vm85 = vcmask 261120
    %v87 = vsel %vm85, %v61, 0
    %89 = vmatprep.subr.bf16.mxu0 0
    %90 = vmatpush1.bf16.msra.mxu0 %v81
    %91 = vmatprep.subr.bf16.mxu0 0
    %92 = vmatpush1.bf16.msra.mxu0 %v82
    %93 = vmatprep.subr.bf16.mxu0 0
    %94 = vmatpush1.bf16.msra.mxu0 0
    %95 = vmatprep.subr.bf16.mxu0 0
    %96 = vmatpush1.bf16.msra.mxu0 0
    %97 = vmatprep.subr.bf16.mxu0 0
    %98 = vmatpush1.bf16.msra.mxu0 0
    %99 = vmatprep.subr.bf16.mxu0 0
    %100 = vmatpush1.bf16.msra.mxu0 0
    %101 = vmatprep.subr.bf16.mxu0 0
    %102 = vmatpush1.bf16.msra.mxu0 0
    %103 = vmatprep.subr.bf16.mxu0 0
    %104 = vmatpush1.bf16.msra.mxu0 0
    %105 = vmatprep.subr.bf16.mxu0 0
    %106 = vmatpush1.bf16.msra.mxu0 0
    %107 = vmatprep.subr.bf16.mxu0 0
    %108 = vmatpush1.bf16.msra.mxu0 0
    %109 = vmatprep.subr.bf16.mxu0 0
    %110 = vmatpush1.bf16.msra.mxu0 0
    %111 = vmatprep.subr.bf16.mxu0 0
    %112 = vmatpush1.bf16.msra.mxu0 0
    %113 = vmatprep.subr.bf16.mxu0 0
    %114 = vmatpush1.bf16.msra.mxu0 0
    %115 = vmatprep.subr.bf16.mxu0 0
    %116 = vmatpush1.bf16.msra.mxu0 0
    %117 = vmatprep.subr.bf16.mxu0 0
    %118 = vmatpush1.bf16.msra.mxu0 0
    %119 = vmatprep.subr.bf16.mxu0 0
    %120 = vmatpush1.bf16.msra.mxu0 0
    %121 = vmatprep.mubr.bf16.mxu0 0
    %122 = vmatmul.mubr.bf16.gmra.mrb[0].mxu0 %v87
    %v123 = vpop.f32.mrb[0].mxu0
    %v124 = vadd.f32 %v71, %v123
    %v125 = vpop.f32.mrb[0].mxu0
    %v126 = vpop.f32.mrb[0].mxu0
    %v127 = vpop.f32.mrb[0].mxu0
    %128 = vdwg.mxu0
    %v129 = vpack.c.bf16 %v124, %v124
    %v130 = vld [vmem:[#allocation7] sm:$0xff]
    %v131 = vld [vmem:[#allocation7 + $0x8] sm:$0xff]
    %v132 = vld [vmem:[#allocation7 + $0x10] sm:$0xff]
    %v133 = vld [vmem:[#allocation7 + $0x18] sm:$0xff]
    %v134 = vld [vmem:[#allocation7 + $0x20] sm:$0xff]
    %v135 = vld [vmem:[#allocation7 + $0x28] sm:$0xff]
    %v136 = vld [vmem:[#allocation7 + $0x30] sm:$0xff]
    %v137 = vld [vmem:[#allocation7 + $0x38] sm:$0xff]
    %v138 = vld [vmem:[#allocation7 + $0x40] sm:$0xff]
    %v139 = vld [vmem:[#allocation7 + $0x48] sm:$0xff]
    %v140 = vld [vmem:[#allocation7 + $0x50] sm:$0xff]
    %v141 = vld [vmem:[#allocation7 + $0x58] sm:$0xff]
    %v142 = vld [vmem:[#allocation7 + $0x60] sm:$0xff]
    %v143 = vld [vmem:[#allocation7 + $0x68] sm:$0xff]
    %v144 = vld [vmem:[#allocation7 + $0x70] sm:$0xff]
    %v145 = vld [vmem:[#allocation7 + $0x78] sm:$0xff]
    %v146 = vld [vmem:[#allocation7 + $0x80] sm:$0xff]
    %v147 = vld [vmem:[#allocation7 + $0x88] sm:$0xff]
    %v148 = vld [vmem:[#allocation7 + $0x90] sm:$0xff]
    %v149 = vld [vmem:[#allocation7 + $0x98] sm:$0xff]
    %v150 = vld [vmem:[#allocation7 + $0xa0] sm:$0xff]
    %v151 = vld [vmem:[#allocation7 + $0xa8] sm:$0xff]
    %v152 = vld [vmem:[#allocation7 + $0xb0] sm:$0xff]
    %v153 = vld [vmem:[#allocation7 + $0xb8] sm:$0xff]
    %v154 = vld [vmem:[#allocation7 + $0xc0] sm:$0xff]
    %v155 = vld [vmem:[#allocation7 + $0xc8] sm:$0xff]
    %v156 = vld [vmem:[#allocation7 + $0xd0] sm:$0xff]
    %v157 = vld [vmem:[#allocation7 + $0xd8] sm:$0xff]
    %v158 = vld [vmem:[#allocation7 + $0xe0] sm:$0xff]
    %v159 = vld [vmem:[#allocation7 + $0xe8] sm:$0xff]
    %v160 = vld [vmem:[#allocation7 + $0xf0] sm:$0xff]
    %v161 = vld [vmem:[#allocation7 + $0xf8] sm:$0xff]
    %v162 = vld [vmem:[%s4] sm:$0xff]
    %v164 = vlaneseq
    %v165 = vshrl.u32 %v164, 7
    %v166 = vsub.s32 0, %v165
    %v167 = vrot.slane %v162, %v166
    %v168 = vlaneseq
    %v169 = vshrl.u32 %v168, 7
    %v170 = vsub.s32 1, %v169
    %v171 = vrot.slane %v162, %v170
    %v172 = vlaneseq
    %v173 = vshrl.u32 %v172, 7
    %v174 = vsub.s32 2, %v173
    %v175 = vrot.slane %v162, %v174
    %v176 = vlaneseq
    %v177 = vshrl.u32 %v176, 7
    %v178 = vsub.s32 3, %v177
    %v179 = vrot.slane %v162, %v178
    %v180 = vlaneseq
    %v181 = vshrl.u32 %v180, 7
    %v182 = vsub.s32 4, %v181
    %v183 = vrot.slane %v162, %v182
    %v184 = vlaneseq
    %v185 = vshrl.u32 %v184, 7
    %v186 = vsub.s32 5, %v185
    %v187 = vrot.slane %v162, %v186
    %v188 = vlaneseq
    %v189 = vshrl.u32 %v188, 7
    %v190 = vsub.s32 6, %v189
    %v191 = vrot.slane %v162, %v190
    %v192 = vlaneseq
    %v193 = vshrl.u32 %v192, 7
    %v194 = vsub.s32 7, %v193
    %v195 = vrot.slane %v162, %v194
    %v236 = vunpack.c.l.b16 %v130
    %v237 = vunpack.c.h.b16 %v130
    %v238 = vunpack.c.l.b16 %v131
    %v239 = vunpack.c.h.b16 %v131
    %v240 = vunpack.c.l.b16 %v132
    %v241 = vunpack.c.h.b16 %v132
    %v242 = vunpack.c.l.b16 %v133
    %v243 = vunpack.c.h.b16 %v133
    %v244 = vunpack.c.l.b16 %v134
    %v245 = vunpack.c.h.b16 %v134
    %v246 = vunpack.c.l.b16 %v135
    %v247 = vunpack.c.h.b16 %v135
    %v248 = vunpack.c.l.b16 %v136
    %v249 = vunpack.c.h.b16 %v136
    %v250 = vunpack.c.l.b16 %v137
    %v251 = vunpack.c.h.b16 %v137
    %v252 = vunpack.c.l.b16 %v138
    %v253 = vunpack.c.h.b16 %v138
    %v254 = vunpack.c.l.b16 %v139
    %v255 = vunpack.c.h.b16 %v139
    %v256 = vunpack.c.l.b16 %v140
    %v257 = vunpack.c.h.b16 %v140
    %v258 = vunpack.c.l.b16 %v141
    %v259 = vunpack.c.h.b16 %v141
    %v260 = vunpack.c.l.b16 %v142
    %v261 = vunpack.c.h.b16 %v142
    %v262 = vunpack.c.l.b16 %v143
    %v263 = vunpack.c.h.b16 %v143
    %v264 = vunpack.c.l.b16 %v144
    %v265 = vunpack.c.h.b16 %v144
    %v266 = vunpack.c.l.b16 %v145
    %v267 = vunpack.c.h.b16 %v145
    %v268 = vunpack.c.l.b16 %v146
    %v269 = vunpack.c.h.b16 %v146
    %v270 = vunpack.c.l.b16 %v147
    %v271 = vunpack.c.h.b16 %v147
    %v272 = vunpack.c.l.b16 %v148
    %v273 = vunpack.c.h.b16 %v148
    %v274 = vunpack.c.l.b16 %v149
    %v275 = vunpack.c.h.b16 %v149
    %v276 = vunpack.c.l.b16 %v150
    %v277 = vunpack.c.h.b16 %v150
    %v278 = vunpack.c.l.b16 %v151
    %v279 = vunpack.c.h.b16 %v151
    %v280 = vunpack.c.l.b16 %v152
    %v281 = vunpack.c.h.b16 %v152
    %v282 = vunpack.c.l.b16 %v153
    %v283 = vunpack.c.h.b16 %v153
    %v284 = vunpack.c.l.b16 %v154
    %v285 = vunpack.c.h.b16 %v154
    %v286 = vunpack.c.l.b16 %v155
    %v287 = vunpack.c.h.b16 %v155
    %v288 = vunpack.c.l.b16 %v156
    %v289 = vunpack.c.h.b16 %v156
    %v290 = vunpack.c.l.b16 %v157
    %v291 = vunpack.c.h.b16 %v157
    %v292 = vunpack.c.l.b16 %v158
    %v293 = vunpack.c.h.b16 %v158
    %v294 = vunpack.c.l.b16 %v159
    %v295 = vunpack.c.h.b16 %v159
    %v296 = vunpack.c.l.b16 %v160
    %v297 = vunpack.c.h.b16 %v160
    %v298 = vunpack.c.l.b16 %v161
    %v299 = vunpack.c.h.b16 %v161
    %v300 = vpack.c.b16 %v244, %v236
    %v301 = vpack.c.b16 %v245, %v237
    %v302 = vpack.c.b16 %v246, %v238
    %v303 = vpack.c.b16 %v247, %v239
    %v304 = vpack.c.b16 %v248, %v240
    %v305 = vpack.c.b16 %v249, %v241
    %v306 = vpack.c.b16 %v250, %v242
    %v307 = vpack.c.b16 %v251, %v243
    %v308 = vpack.c.b16 %v260, %v252
    %v309 = vpack.c.b16 %v261, %v253
    %v310 = vpack.c.b16 %v262, %v254
    %v311 = vpack.c.b16 %v263, %v255
    %v312 = vpack.c.b16 %v264, %v256
    %v313 = vpack.c.b16 %v265, %v257
    %v314 = vpack.c.b16 %v266, %v258
    %v315 = vpack.c.b16 %v267, %v259
    %v316 = vpack.c.b16 %v276, %v268
    %v317 = vpack.c.b16 %v277, %v269
    %v318 = vpack.c.b16 %v278, %v270
    %v319 = vpack.c.b16 %v279, %v271
    %v320 = vpack.c.b16 %v280, %v272
    %v321 = vpack.c.b16 %v281, %v273
    %v322 = vpack.c.b16 %v282, %v274
    %v323 = vpack.c.b16 %v283, %v275
    %v324 = vpack.c.b16 %v292, %v284
    %v325 = vpack.c.b16 %v293, %v285
    %v326 = vpack.c.b16 %v294, %v286
    %v327 = vpack.c.b16 %v295, %v287
    %v328 = vpack.c.b16 %v296, %v288
    %v329 = vpack.c.b16 %v297, %v289
    %v330 = vpack.c.b16 %v298, %v290
    %v331 = vpack.c.b16 %v299, %v291
    %vm364 = vcmask 523264
    %v366 = vsel %vm364, %v129, 0
    %368 = vmatprep.subr.bf16.mxu0 %v301
    %369 = vmatpush1.bf16.msra.mxu0 %v300
    %370 = vmatprep.subr.bf16.mxu0 %v309
    %371 = vmatpush1.bf16.msra.mxu0 %v308
    %372 = vmatprep.subr.bf16.mxu0 %v317
    %373 = vmatpush1.bf16.msra.mxu0 %v316
    %374 = vmatprep.subr.bf16.mxu0 %v325
    %375 = vmatpush1.bf16.msra.mxu0 %v324
    %376 = vmatprep.subr.bf16.mxu0 0
    %377 = vmatpush1.bf16.msra.mxu0 0
    %378 = vmatprep.subr.bf16.mxu0 0
    %379 = vmatpush1.bf16.msra.mxu0 0
    %380 = vmatprep.subr.bf16.mxu0 0
    %381 = vmatpush1.bf16.msra.mxu0 0
    %382 = vmatprep.subr.bf16.mxu0 0
    %383 = vmatpush1.bf16.msra.mxu0 0
    %384 = vmatprep.subr.bf16.mxu0 0
    %385 = vmatpush1.bf16.msra.mxu0 0
    %386 = vmatprep.subr.bf16.mxu0 0
    %387 = vmatpush1.bf16.msra.mxu0 0
    %388 = vmatprep.subr.bf16.mxu0 0
    %389 = vmatpush1.bf16.msra.mxu0 0
    %390 = vmatprep.subr.bf16.mxu0 0
    %391 = vmatpush1.bf16.msra.mxu0 0
    %392 = vmatprep.subr.bf16.mxu0 0
    %393 = vmatpush1.bf16.msra.mxu0 0
    %394 = vmatprep.subr.bf16.mxu0 0
    %395 = vmatpush1.bf16.msra.mxu0 0
    %396 = vmatprep.subr.bf16.mxu0 0
    %397 = vmatpush1.bf16.msra.mxu0 0
    %398 = vmatprep.subr.bf16.mxu0 0
    %399 = vmatpush1.bf16.msra.mxu0 0
    %400 = vmatprep.mubr.bf16.mxu0 0
    %401 = vmatmul.mubr.bf16.gmra.mrb[0].mxu0 %v366
    %v402 = vpop.f32.mrb[0].mxu0
    %v403 = vadd.f32 %v167, %v402
    %v404 = vpop.f32.mrb[0].mxu0
    %v405 = vadd.f32 %v171, %v404
    %v406 = vpop.f32.mrb[0].mxu0
    %v407 = vpop.f32.mrb[0].mxu0
    %408 = vdwg.mxu0
    %409 = vmatprep.subr.bf16.mxu0 %v303
    %410 = vmatpush1.bf16.msra.mxu0 %v302
    %411 = vmatprep.subr.bf16.mxu0 %v311
    %412 = vmatpush1.bf16.msra.mxu0 %v310
    %413 = vmatprep.subr.bf16.mxu0 %v319
    %414 = vmatpush1.bf16.msra.mxu0 %v318
    %415 = vmatprep.subr.bf16.mxu0 %v327
    %416 = vmatpush1.bf16.msra.mxu0 %v326
    %417 = vmatprep.subr.bf16.mxu0 0
    %418 = vmatpush1.bf16.msra.mxu0 0
    %419 = vmatprep.subr.bf16.mxu0 0
    %420 = vmatpush1.bf16.msra.mxu0 0
    %421 = vmatprep.subr.bf16.mxu0 0
    %422 = vmatpush1.bf16.msra.mxu0 0
    %423 = vmatprep.subr.bf16.mxu0 0
    %424 = vmatpush1.bf16.msra.mxu0 0
    %425 = vmatprep.subr.bf16.mxu0 0
    %426 = vmatpush1.bf16.msra.mxu0 0
    %427 = vmatprep.subr.bf16.mxu0 0
    %428 = vmatpush1.bf16.msra.mxu0 0
    %429 = vmatprep.subr.bf16.mxu0 0
    %430 = vmatpush1.bf16.msra.mxu0 0
    %431 = vmatprep.subr.bf16.mxu0 0
    %432 = vmatpush1.bf16.msra.mxu0 0
    %433 = vmatprep.subr.bf16.mxu0 0
    %434 = vmatpush1.bf16.msra.mxu0 0
    %435 = vmatprep.subr.bf16.mxu0 0
    %436 = vmatpush1.bf16.msra.mxu0 0
    %437 = vmatprep.subr.bf16.mxu0 0
    %438 = vmatpush1.bf16.msra.mxu0 0
    %439 = vmatprep.subr.bf16.mxu0 0
    %440 = vmatpush1.bf16.msra.mxu0 0
    %441 = vmatprep.mubr.bf16.mxu0 0
    %442 = vmatmul.mubr.bf16.gmra.mrb[0].mxu0 %v366
    %v443 = vpop.f32.mrb[0].mxu0
    %v444 = vadd.f32 %v175, %v443
    %v445 = vpop.f32.mrb[0].mxu0
    %v446 = vadd.f32 %v179, %v445
    %v447 = vpop.f32.mrb[0].mxu0
    %v448 = vpop.f32.mrb[0].mxu0
    %449 = vdwg.mxu0
    %450 = vmatprep.subr.bf16.mxu0 %v305
    %451 = vmatpush1.bf16.msra.mxu0 %v304
    %452 = vmatprep.subr.bf16.mxu0 %v313
    %453 = vmatpush1.bf16.msra.mxu0 %v312
    %454 = vmatprep.subr.bf16.mxu0 %v321
    %455 = vmatpush1.bf16.msra.mxu0 %v320
    %456 = vmatprep.subr.bf16.mxu0 %v329
    %457 = vmatpush1.bf16.msra.mxu0 %v328
    %458 = vmatprep.subr.bf16.mxu0 0
    %459 = vmatpush1.bf16.msra.mxu0 0
    %460 = vmatprep.subr.bf16.mxu0 0
    %461 = vmatpush1.bf16.msra.mxu0 0
    %462 = vmatprep.subr.bf16.mxu0 0
    %463 = vmatpush1.bf16.msra.mxu0 0
    %464 = vmatprep.subr.bf16.mxu0 0
    %465 = vmatpush1.bf16.msra.mxu0 0
    %466 = vmatprep.subr.bf16.mxu0 0
    %467 = vmatpush1.bf16.msra.mxu0 0
    %468 = vmatprep.subr.bf16.mxu0 0
    %469 = vmatpush1.bf16.msra.mxu0 0
    %470 = vmatprep.subr.bf16.mxu0 0
    %471 = vmatpush1.bf16.msra.mxu0 0
    %472 = vmatprep.subr.bf16.mxu0 0
    %473 = vmatpush1.bf16.msra.mxu0 0
    %474 = vmatprep.subr.bf16.mxu0 0
    %475 = vmatpush1.bf16.msra.mxu0 0
    %476 = vmatprep.subr.bf16.mxu0 0
    %477 = vmatpush1.bf16.msra.mxu0 0
    %478 = vmatprep.subr.bf16.mxu0 0
    %479 = vmatpush1.bf16.msra.mxu0 0
    %480 = vmatprep.subr.bf16.mxu0 0
    %481 = vmatpush1.bf16.msra.mxu0 0
    %482 = vmatprep.mubr.bf16.mxu0 0
    %483 = vmatmul.mubr.bf16.gmra.mrb[0].mxu0 %v366
    %v484 = vpop.f32.mrb[0].mxu0
    %v485 = vadd.f32 %v183, %v484
    %v486 = vpop.f32.mrb[0].mxu0
    %v487 = vadd.f32 %v187, %v486
    %v488 = vpop.f32.mrb[0].mxu0
    %v489 = vpop.f32.mrb[0].mxu0
    %490 = vdwg.mxu0
    %491 = vmatprep.subr.bf16.mxu0 %v307
    %492 = vmatpush1.bf16.msra.mxu0 %v306
    %493 = vmatprep.subr.bf16.mxu0 %v315
    %494 = vmatpush1.bf16.msra.mxu0 %v314
    %495 = vmatprep.subr.bf16.mxu0 %v323
    %496 = vmatpush1.bf16.msra.mxu0 %v322
    %497 = vmatprep.subr.bf16.mxu0 %v331
    %498 = vmatpush1.bf16.msra.mxu0 %v330
    %499 = vmatprep.subr.bf16.mxu0 0
    %500 = vmatpush1.bf16.msra.mxu0 0
    %501 = vmatprep.subr.bf16.mxu0 0
    %502 = vmatpush1.bf16.msra.mxu0 0
    %503 = vmatprep.subr.bf16.mxu0 0
    %504 = vmatpush1.bf16.msra.mxu0 0
    %505 = vmatprep.subr.bf16.mxu0 0
    %506 = vmatpush1.bf16.msra.mxu0 0
    %507 = vmatprep.subr.bf16.mxu0 0
    %508 = vmatpush1.bf16.msra.mxu0 0
    %509 = vmatprep.subr.bf16.mxu0 0
    %510 = vmatpush1.bf16.msra.mxu0 0
    %511 = vmatprep.subr.bf16.mxu0 0
    %512 = vmatpush1.bf16.msra.mxu0 0
    %513 = vmatprep.subr.bf16.mxu0 0
    %514 = vmatpush1.bf16.msra.mxu0 0
    %515 = vmatprep.subr.bf16.mxu0 0
    %516 = vmatpush1.bf16.msra.mxu0 0
    %517 = vmatprep.subr.bf16.mxu0 0
    %518 = vmatpush1.bf16.msra.mxu0 0
    %519 = vmatprep.subr.bf16.mxu0 0
    %520 = vmatpush1.bf16.msra.mxu0 0
    %521 = vmatprep.subr.bf16.mxu0 0
    %522 = vmatpush1.bf16.msra.mxu0 0
    %523 = vmatprep.mubr.bf16.mxu0 0
    %524 = vmatmul.mubr.bf16.gmra.mrb[0].mxu0 %v366
    %v525 = vpop.f32.mrb[0].mxu0
    %v526 = vadd.f32 %v191, %v525
    %v527 = vpop.f32.mrb[0].mxu0
    %v528 = vadd.f32 %v195, %v527
    %v529 = vpop.f32.mrb[0].mxu0
    %v530 = vpop.f32.mrb[0].mxu0
    %531 = vdwg.mxu0
    %v532 = vtanh.pop %v403
    %v533 = vtanh.pop %v405
    %v534 = vtanh.pop %v444
    %v535 = vtanh.pop %v446
    %v536 = vtanh.pop %v485
    %v537 = vtanh.pop %v487
    %v538 = vtanh.pop %v526
    %v539 = vtanh.pop %v528
    %540 = vst [vmem:[#allocation8] sm:$0xff] %v532
    %541 = vst [vmem:[#allocation8 + $0x8] sm:$0xff] %v533
    %542 = vst [vmem:[#allocation8 + $0x10] sm:$0xff] %v534
    %543 = vst [vmem:[#allocation8 + $0x18] sm:$0xff] %v535
    %544 = vst [vmem:[#allocation8 + $0x20] sm:$0xff] %v536
    %545 = vst [vmem:[#allocation8 + $0x28] sm:$0xff] %v537
    %546 = vst [vmem:[#allocation8 + $0x30] sm:$0xff] %v538
    %547 = vst [vmem:[#allocation8 + $0x38] sm:$0xff] %v539
    // Predicated region
    $region34: #{tpu_custom_call.1} parent=1 // pred_check
      _
    $region35: #{tpu_custom_call.1} parent=1 // pred_check_branch
      %549 = sbr.rel (0) target = $region37
    $region36: #{tpu_custom_call.1} parent=1 // pred_region
      %s551 = ssub.s32 1024, 1024
      %552 = vsyncadd [#allocation4], %s551
      %s554 = sshll.u32 [#allocation8], 4
      %s555 = int_to_ptr.vmem [resolvable:$true] %s554
      %557 = dma.vmem_to_hbm [thread:$0]  %s555, 1024, %s5, [#allocation4]
    $region37: #{tpu_custom_call.1} parent=1 // pred_fallthru
      _
    // Predicated region
    $region38: #{tpu_custom_call.1} parent=1 // pred_check
      _
    $region39: #{tpu_custom_call.1} parent=1 // pred_check_branch
      %559 = sbr.rel (0) target = $region41
    $region40: #{tpu_custom_call.1} parent=1 // pred_region
      %560 = dma.done [#allocation4], 1024
    $region41: #{tpu_custom_call.1} parent=1 // pred_fallthru
      _
    %561 = vsyncpa [#allocation3], 1
    %562 = vsyncpa [#allocation6], 1
    %563 = vsyncpa [#allocation4], 1

</llo_original>
